<compile_context>
chip_gen: v7x
topology: tpu7x:2x2x1
jax: 0.10.0
libtpu: 0.0.40
codegen_flags: <defaults>
</compile_context>

<pallas_src>
import functools

import jax
import jax.numpy as jnp
from jax.experimental import pallas as pl
from jax.experimental.pallas import tpu as pltpu


def _rmsnorm_kernel(x_ref, w_ref, o_ref, *, eps):
    # Mirror rms_layernorm semantics:
    #   variance = mean(x.float()**2, -1, keepdim=True)
    #   hidden   = (x * rsqrt(variance + eps)).to(old_dtype)
    #   out      = hidden * weight
    x = x_ref[...]                                            # (tile_rows, H)
    xf = x.astype(jnp.float32)
    variance = jnp.mean(xf * xf, axis=-1, keepdims=True)      # (tile_rows, 1) f32
    inv = jax.lax.rsqrt(variance + eps)                       # (tile_rows, 1) f32
    normed = (xf * inv).astype(x.dtype)                       # back to old dtype
    o_ref[...] = (normed * w_ref[...]).astype(o_ref.dtype)    # promote like torch


def _chip_budgets():
    """Returns (vmem_budget_bytes for pipeline+scratch, vmem_limit_bytes)."""
    kind = ""
    try:
        kind = jax.devices()[0].device_kind.lower()
    except Exception:
        pass
    if "v7" in kind or "7x" in kind:
        # v7x: only 64 MiB physical VMEM per TensorCore -> stay well under.
        return 28 * 1024 * 1024, 44 * 1024 * 1024
    if "v6" in kind or "trillium" in kind:
        # v6e: 128 MiB physical VMEM -> largest budget.
        return 40 * 1024 * 1024, 64 * 1024 * 1024
    # v5e and unknown chips: conservative (default scoped limit is 16 MiB;
    # physical is 128 MiB, so a 24 MiB explicit limit is still safe).
    return 14 * 1024 * 1024, 24 * 1024 * 1024


def _pick_tile_rows(rows, hidden, in_itemsize, out_itemsize, budget_bytes):
    """Row tile that (a) packs sublanes, (b) is byte-targeted, (c) fits VMEM."""
    # Sublane packing of the narrowest dtype actually tiled:
    #   f32 -> 8 rows/vreg, bf16 -> 16, int8/fp8 -> 32.
    min_rows = max(8, 32 // max(1, min(in_itemsize, out_itemsize)))

    # Preference: ~4 MiB of input bytes per block so the ~0.35 us/step
    # pipeline overhead is amortized and DMAs are large.
    target_block_bytes = 4 * 1024 * 1024
    tile = max(min_rows, target_block_bytes // (hidden * in_itemsize))

    # Cap: double-buffered input + output blocks plus ~2 f32-wide in-kernel
    # intermediates per row must fit the per-generation VMEM budget.
    per_row_bytes = hidden * (2 * in_itemsize + 2 * out_itemsize + 2 * 4)
    tile = min(tile, max(min_rows, budget_bytes // per_row_bytes))

    # No point tiling bigger than the (row-aligned) problem itself.
    rows_aligned = pl.cdiv(rows, min_rows) * min_rows
    tile = min(tile, rows_aligned)

    # Megacore: keep >= ~8 grid steps when the problem allows so the
    # "parallel" row axis can feed both v7x TensorCores + pipeline buffers.
    target_steps = 8
    step_cap = (rows // target_steps) // min_rows * min_rows
    if step_cap >= min_rows:
        tile = min(tile, step_cap)

    # Round down to the packing granularity.
    tile = max(min_rows, (tile // min_rows) * min_rows)
    return tile


def minicpm_rmsnorm(hidden_states, weight, eps=1e-6, *, tile_rows=None):
    """RMSNorm over the last axis of `hidden_states` with per-channel `weight`."""
    orig_shape = hidden_states.shape
    hidden = orig_shape[-1]
    x2d = hidden_states.reshape(-1, hidden)
    rows = x2d.shape[0]

    out_dtype = jnp.result_type(hidden_states.dtype, weight.dtype)
    in_b = jnp.dtype(hidden_states.dtype).itemsize
    out_b = jnp.dtype(out_dtype).itemsize
    w_b = jnp.dtype(weight.dtype).itemsize

    budget_bytes, vmem_limit = _chip_budgets()
    if tile_rows is None:
        tile_rows = _pick_tile_rows(rows, hidden, in_b, out_b, budget_bytes)

    w2d = weight.reshape(1, hidden)

    # Ragged rows: no pad / slice.  grid = cdiv(rows, tile); the partial final
    # block reads undefined rows but RMSNorm is row-independent and Pallas
    # clips out-of-bounds output writes, so valid rows are unaffected.
    grid = (pl.cdiv(rows, tile_rows),)

    cost = pl.CostEstimate(
        flops=4 * rows * hidden,
        transcendentals=rows,
        bytes_accessed=rows * hidden * (in_b + out_b) + hidden * w_b,
    )

    out = pl.pallas_call(
        functools.partial(_rmsnorm_kernel, eps=eps),
        out_shape=jax.ShapeDtypeStruct((rows, hidden), out_dtype),
        grid_spec=pltpu.PrefetchScalarGridSpec(
            num_scalar_prefetch=0,
            grid=grid,
            in_specs=[
                pl.BlockSpec((tile_rows, hidden), lambda i: (i, 0)),
                # Constant index map -> weight stays resident, no re-DMA.
                pl.BlockSpec((1, hidden), lambda i: (0, 0)),
            ],
            out_specs=pl.BlockSpec((tile_rows, hidden), lambda i: (i, 0)),
        ),
        compiler_params=pltpu.CompilerParams(
            dimension_semantics=("parallel",),
            vmem_limit_bytes=vmem_limit,
        ),
        cost_estimate=cost,
    )(x2d, w2d)

    return out.reshape(orig_shape[:-1] + (hidden,))


if __name__ == "__main__":
    eps = 1e-6
    key = jax.random.PRNGKey(0)

    def ref_rmsnorm(x, weight):
        xf = x.astype(jnp.float32)
        var = jnp.mean(xf * xf, axis=-1, keepdims=True)
        return (xf * jax.lax.rsqrt(var + eps)).astype(x.dtype) * weight

    ok = True
    k1, k2, k3 = jax.random.split(key, 3)

    # Case 1: f32, batch=2, seq=8, hidden=32 (rows divide the tile evenly).
    x = jax.random.normal(k1, (2, 8, 32), dtype=jnp.float32)
    w = 1.0 + 0.1 * jax.random.normal(k2, (32,), dtype=jnp.float32)
    out = jax.block_until_ready(minicpm_rmsnorm(x, w, eps))
    ref = ref_rmsnorm(x, w)
    ok &= out.shape == x.shape and out.dtype == ref.dtype
    ok &= bool(jnp.allclose(out, ref, atol=1e-5, rtol=1e-5))

    # Case 2: bf16, ragged rows (3*5=15 -> partial final block, clipped writes).
    x2 = jax.random.normal(k3, (3, 5, 64), dtype=jnp.bfloat16)
    w2 = jnp.ones((64,), dtype=jnp.bfloat16)   # module init: ones(hidden_size)
    out2 = jax.block_until_ready(minicpm_rmsnorm(x2, w2, eps))
    ref2 = ref_rmsnorm(x2, w2)
    ok &= out2.shape == x2.shape
    ok &= bool(jnp.allclose(out2.astype(jnp.float32), ref2.astype(jnp.float32),
                            atol=2e-2, rtol=2e-2))

    # Case 3: mixed dtypes (bf16 activations, f32 weight) -> f32 output;
    # exercises min_rows derived from the narrowest tiled dtype.
    x3 = jax.random.normal(k1, (2, 24, 128), dtype=jnp.bfloat16)
    w3 = jnp.ones((128,), dtype=jnp.float32)
    out3 = jax.block_until_ready(minicpm_rmsnorm(x3, w3, eps))
    ref3 = ref_rmsnorm(x3, w3)
    ok &= out3.shape == x3.shape and out3.dtype == jnp.float32
    ok &= bool(jnp.allclose(out3, ref3, atol=2e-2, rtol=2e-2))

    assert ok
    print("KERNEL_OK")
</pallas_src>

<mosaic_0001>
module attributes {stable_mosaic.version = 11 : i64} {
  func.func @_rmsnorm_kernel(%arg0: i32, %arg1: memref<16x32xf32, #tpu.memory_space<vmem>>, %arg2: memref<1x32xf32, #tpu.memory_space<vmem>>, %arg3: memref<16x32xf32, #tpu.memory_space<vmem>>) attributes {dimension_semantics = [#tpu.dimension_semantics<parallel>], iteration_bounds = array<i64: 1>, scalar_prefetch = 0 : i64, scratch_operands = 0 : i64, tpu.core_type = #tpu.core_type<tc>, window_params = [{transform_indices = @transform_0, window_bounds = array<i64: 16, 32>}, {pipeline_mode = #tpu.pipeline_mode<synchronous>, transform_indices = @transform_1, window_bounds = array<i64: 1, 32>}, {transform_indices = @transform_2, window_bounds = array<i64: 16, 32>}]} {
    %c0 = arith.constant 0 : index
    %c0_0 = arith.constant 0 : index
    %0 = vector.load %arg1[%c0, %c0_0] : memref<16x32xf32, #tpu.memory_space<vmem>>, vector<16x32xf32>
    %1 = arith.mulf %0, %0 : vector<16x32xf32>
    %cst = arith.constant dense<0.000000e+00> : vector<16xf32>
    %2 = vector.multi_reduction <add>, %1, %cst [1] : vector<16x32xf32> to vector<16xf32>
    %3 = vector.shape_cast %2 : vector<16xf32> to vector<16x1xf32>
    %cst_1 = arith.constant 3.200000e+01 : f32
    %4 = vector.broadcast %cst_1 : f32 to vector<16x1xf32>
    %5 = arith.divf %3, %4 : vector<16x1xf32>
    %cst_2 = arith.constant 9.99999997E-7 : f32
    %6 = vector.broadcast %cst_2 : f32 to vector<16x1xf32>
    %7 = arith.addf %5, %6 : vector<16x1xf32>
    %8 = math.rsqrt %7 : vector<16x1xf32>
    %9 = vector.broadcast %8 : vector<16x1xf32> to vector<16x32xf32>
    %10 = arith.mulf %0, %9 : vector<16x32xf32>
    %c0_3 = arith.constant 0 : index
    %c0_4 = arith.constant 0 : index
    %11 = vector.load %arg2[%c0_3, %c0_4] : memref<1x32xf32, #tpu.memory_space<vmem>>, vector<1x32xf32>
    %12 = vector.broadcast %11 : vector<1x32xf32> to vector<16x32xf32>
    %13 = arith.mulf %10, %12 : vector<16x32xf32>
    %c0_5 = arith.constant 0 : index
    %c0_6 = arith.constant 0 : index
    %14 = vector.load %arg3[%c0_5, %c0_6] : memref<16x32xf32, #tpu.memory_space<vmem>>, vector<16x32xf32>
    tpu.vector_store %arg3[%c0_5, %c0_6], %13 {strides = array<i32>} : memref<16x32xf32, #tpu.memory_space<vmem>>, vector<16x32xf32>,
    return
  }
  func.func @transform_0(%arg0: i32) -> (i32, i32) {
    %c0_i32 = arith.constant 0 : i32
    %c0_i32_0 = arith.constant 0 : i32
    return %arg0, %c0_i32 : i32, i32
  }
  func.func @transform_1(%arg0: i32) -> (i32, i32) {
    %c0_i32 = arith.constant 0 : i32
    %c0_i32_0 = arith.constant 0 : i32
    %c0_i32_1 = arith.constant 0 : i32
    return %c0_i32, %c0_i32_0 : i32, i32
  }
  func.func @transform_2(%arg0: i32) -> (i32, i32) {
    %c0_i32 = arith.constant 0 : i32
    %c0_i32_0 = arith.constant 0 : i32
    return %arg0, %c0_i32 : i32, i32
  }
}

</mosaic_0001>

<llo_original>
// kernel: tpu_custom_call.1
$region0: #{tpu_custom_call.1}
  #allocation0 [shape = 'u32[]', space=smem, size = 0x4, offset = 0x4, fixed_abs, tag = 'smem constant byte address 0x4 - core index']
  #allocation1 [shape = 'u32[144,128]{1,0:T(1,128)}', space=vmem, size = 0x12000, scoped, tag = 'internal scratch']
  %s0 = inlined_call_operand.hbm [shape: f32[16,32], index: 0, kind: input, shape index: {}]
  %s1 = inlined_call_operand.vmem [shape: f32[1,32], index: 1, kind: input, shape index: {}]
  %s2 = inlined_call_operand.hbm [shape: f32[16,32], index: 2, kind: output, shape index: {}]
  %s3 = sld [smem:[#allocation0]]
  $region22: #{tpu_custom_call.1} parent=0
    _
  %s5 = ssub.s32 1, %s3
  %s6 = scalar_select 0, %s5, %s3
  $region1: #{tpu_custom_call.1} parent=0
    #allocation2 [shape = 'u8[8192]{0}', space=vmem, size = 0x2000, scoped, tag = 'input window, operand 0, single buffered']
    #allocation3 [shape = 's32[1]{0}', space=sflag, size = 0x4, scoped, tag = 'scoped memory for tpu_custom_call.1']
    #allocation4 [shape = 's32[1]{0}', space=sflag, size = 0x4, scoped, tag = 'scoped memory for tpu_custom_call.1']
    #allocation5 [shape = 'u8[8192]{0}', space=vmem, size = 0x2000, scoped, tag = 'output window, operand 0, single buffered']
    %7 = vsyncpa [#allocation3], 0
    %8 = vsyncpa [#allocation4], 0
    // Predicated region
    $region2: #{tpu_custom_call.1} parent=1 // pred_check
      _
    $region3: #{tpu_custom_call.1} parent=1 // pred_check_branch
      %10 = sbr.rel (0) target = $region5
    $region4: #{tpu_custom_call.1} parent=1 // pred_region
      %s12 = ssub.s32 256, 256
      %13 = vsyncadd [#allocation3], %s12
      %s14 = sshll.u32 [#allocation2], 4
      %s15 = int_to_ptr.vmem [resolvable:$true] %s14
      %20 = dma.hbm_to_vmem [thread:$0]  %s0, 256, %s15, [#allocation3], 128, 128, 8
    $region5: #{tpu_custom_call.1} parent=1 // pred_fallthru
      _
    // Predicated region
    $region6: #{tpu_custom_call.1} parent=1 // pred_check
      _
    $region7: #{tpu_custom_call.1} parent=1 // pred_check_branch
      %22 = sbr.rel (0) target = $region9
    $region8: #{tpu_custom_call.1} parent=1 // pred_region
      _
    $region9: #{tpu_custom_call.1} parent=1 // pred_fallthru
      _
    // Predicated region
    $region10: #{tpu_custom_call.1} parent=1 // pred_check
      _
    $region11: #{tpu_custom_call.1} parent=1 // pred_check_branch
      %24 = sbr.rel (0) target = $region13
    $region12: #{tpu_custom_call.1} parent=1 // pred_region
      %25 = dma.done [#allocation3], 256
    $region13: #{tpu_custom_call.1} parent=1 // pred_fallthru
      _
    %v26 = vld [vmem:[#allocation2] sm:$0xff]
    %v27 = vld [vmem:[#allocation2 + $0x8] sm:$0xff]
    %v28 = vmul.f32 %v26, %v26
    %v29 = vmul.f32 %v27, %v27
    %vm30 = vcmask 261120
    %v31 = vsel %vm30, %v28, 0.0
    %32 = vadd.xlane.f32.xlu0 %v31
    %v33 = vpop.xlane.xlu0 %32
    %v34 = vsel %vm30, %v29, 0.0
    %35 = vadd.xlane.f32.xlu0 %v34
    %v36 = vpop.xlane.xlu0 %35
    %v37 = vrcp.pop 32.0
    %v38 = vmul.f32 %v33, %v37
    %v39 = vmul.f32 %v36, %v37
    %v40 = vadd.f32 %v38, 1e-06
    %v41 = vadd.f32 %v39, 1e-06
    %v42 = vrsqrt.pop %v40
    %v43 = vrsqrt.pop %v41
    %v44 = vmul.f32 %v26, %v42
    %v45 = vmul.f32 %v27, %v43
    %v46 = vld [vmem:[%s1] sm:$0x1]
    %v48 = vlaneseq
    %v49 = vshrl.u32 %v48, 7
    %v50 = vsub.s32 0, %v49
    %v51 = vrot.slane %v46, %v50
    %v53 = vmul.f32 %v44, %v51
    %v54 = vmul.f32 %v45, %v51
    %55 = vst.msk [vmem:[#allocation5] sm:$0xff] %vm30, %v53
    %56 = vst.msk [vmem:[#allocation5 + $0x8] sm:$0xff] %vm30, %v54
    // Predicated region
    $region14: #{tpu_custom_call.1} parent=1 // pred_check
      _
    $region15: #{tpu_custom_call.1} parent=1 // pred_check_branch
      %58 = sbr.rel (0) target = $region17
    $region16: #{tpu_custom_call.1} parent=1 // pred_region
      %s60 = ssub.s32 256, 256
      %61 = vsyncadd [#allocation4], %s60
      %s62 = sshll.u32 [#allocation5], 4
      %s63 = int_to_ptr.vmem [resolvable:$true] %s62
      %68 = dma.vmem_to_hbm [thread:$0]  %s63, 256, %s2, [#allocation4], 128, 128, 8
    $region17: #{tpu_custom_call.1} parent=1 // pred_fallthru
      _
    // Predicated region
    $region18: #{tpu_custom_call.1} parent=1 // pred_check
      _
    $region19: #{tpu_custom_call.1} parent=1 // pred_check_branch
      %70 = sbr.rel (0) target = $region21
    $region20: #{tpu_custom_call.1} parent=1 // pred_region
      %71 = dma.done [#allocation4], 256
    $region21: #{tpu_custom_call.1} parent=1 // pred_fallthru
      _
    %72 = vsyncpa [#allocation3], 1
    %73 = vsyncpa [#allocation4], 1

</llo_original>
